<compile_context>
chip_gen: v5e
topology: v5e:2x2
jax: 0.10.0
libtpu: 0.0.40
codegen_flags: <defaults>
</compile_context>

<pallas_src>
import jax
import jax.numpy as jnp
from jax.experimental import pallas as pl
from jax.experimental.pallas import tpu as pltpu

LANES = 128


def _round_up(x, m):
    return ((x + m - 1) // m) * m


def _chip_config():
    """Returns (num_shards, tile_bytes_per_input_block, vmem_limit_bytes)."""
    kind = ""
    try:
        kind = jax.devices()[0].device_kind.lower()
    except Exception:
        pass
    if "v7" in kind:
        # 2 TensorCores / chip, 64 MiB VMEM per TC: shard across TCs, medium blocks.
        return 2, 4 << 20, 32 << 20
    if any(t in kind for t in ("v5 lite", "v5lite", "v5e", "v6")):
        # Single TC, 128 MiB VMEM: 4 MiB blocks, raised scoped-VMEM limit.
        return 1, 4 << 20, 64 << 20
    # Unknown / older chip: conservative defaults (leave scoped limit alone).
    return 1, 2 << 20, None


def _make_kernel(tile_rows, acc_rows, steps_per_shard, valid_rows, needs_mask):
    groups = tile_rows // acc_rows

    def kernel(mu_ref, sigma_ref, out_ref):
        i = pl.program_id(1)

        # out_ref is this shard's resident (acc_rows, 128) f32 accumulator
        # (constant block index along the "arbitrary" reduction axis).
        @pl.when(i == 0)
        def _():
            out_ref[...] = jnp.zeros_like(out_ref)

        m = mu_ref[...].astype(jnp.float32)
        s = sigma_ref[...].astype(jnp.float32)
        val = -jnp.log(s) + (s * s + m * m) * 0.5 - 0.5

        def accumulate(v):
            # Lane/sublane-shaped partial sums: plain VPU adds, no per-step XLU.
            out_ref[...] += v.reshape(groups, acc_rows, LANES).sum(axis=0)

        if needs_mask:
            # Logical (UNclamped) block index: a clamped duplicate block of a
            # trailing shard has row0 >= valid_rows and is zeroed entirely.
            blk = pl.program_id(0) * steps_per_shard + i
            row0 = blk * tile_rows
            is_full = row0 + tile_rows <= valid_rows

            # Interior blocks: pure streaming accumulate, no mask cost.
            @pl.when(is_full)
            def _():
                accumulate(val)

            # Tail / clamped-duplicate blocks only: iota + compare + select.
            @pl.when(jnp.logical_not(is_full))
            def _():
                rid = row0 + jax.lax.broadcasted_iota(
                    jnp.int32, (tile_rows, LANES), 0)
                # jnp.where lowers to a select, so NaN/Inf from log() on
                # unspecified padding rows never propagates.
                accumulate(jnp.where(rid < valid_rows, val, 0.0))
        else:
            accumulate(val)

    return kernel


def kl_div_loss(mu_posterior, sigma_posterior):
    """sum(-log(sigma) + (sigma^2 + mu^2)/2 - 0.5) over all elements."""
    assert mu_posterior.shape == sigma_posterior.shape
    mu = jnp.reshape(mu_posterior, (-1,))
    sigma = jnp.reshape(sigma_posterior, (-1,))
    n = mu.shape[0]

    num_shards, tile_bytes, vmem_limit = _chip_config()

    # Rare fallback only: if n is not a multiple of 128 pad the tail so the
    # data can be viewed as a lane-dense (rows, 128) slab.  (mu=0, sigma=1) is
    # the neutral element and contributes exactly 0.  The common case performs
    # no host-side copy at all (reshape of a contiguous array is free).
    rem = n % LANES
    if rem:
        pad = LANES - rem
        mu = jnp.concatenate([mu, jnp.zeros((pad,), mu.dtype)])
        sigma = jnp.concatenate([sigma, jnp.ones((pad,), sigma.dtype)])

    rows = mu.shape[0] // LANES
    mu2d = mu.reshape(rows, LANES)
    sigma2d = sigma.reshape(rows, LANES)

    # Block size targets ~tile_bytes per input block regardless of dtype
    # (bf16 inputs get 2x the rows for the same HBM bytes per step).
    itemsize = jnp.dtype(mu.dtype).itemsize
    max_tile_rows = max(8, (tile_bytes // (LANES * itemsize)) // 8 * 8)
    tile_rows = min(max_tile_rows, _round_up(rows, 8))

    # Wider accumulator (when the tile allows): 8 independent vreg add chains
    # per step instead of one long serial chain into a single (8,128) block.
    acc_rows = 64 if tile_rows % 64 == 0 else 8

    num_blocks = -(-rows // tile_rows)
    steps_per_shard = -(-num_blocks // num_shards)
    padded_blocks = steps_per_shard * num_shards
    needs_mask = padded_blocks * tile_rows != rows
    last_block = num_blocks - 1

    def in_index(c, i):
        blk = c * steps_per_shard + i
        if needs_mask:
            # Never request a block that starts past the array; duplicated
            # data read here is zeroed by the in-kernel row mask.
            blk = jnp.minimum(blk, last_block)
        return (blk, 0)

    kernel = _make_kernel(tile_rows, acc_rows, steps_per_shard, rows, needs_mask)

    # On v7x only CORE_PARALLEL actually splits a grid axis across the two
    # TensorCores; plain "parallel" barely changes codegen.  On single-TC
    # chips the leading axis has size 1 and is just a no-op outer loop.
    if num_shards > 1 and hasattr(pltpu, "CORE_PARALLEL"):
        dim_sem = (pltpu.CORE_PARALLEL, pltpu.ARBITRARY)
    elif num_shards > 1:
        dim_sem = ("parallel", "arbitrary")
    else:
        dim_sem = ("arbitrary", "arbitrary")

    compiler_params = pltpu.CompilerParams(
        dimension_semantics=dim_sem,
        vmem_limit_bytes=vmem_limit,
    )

    out = pl.pallas_call(
        kernel,
        out_shape=jax.ShapeDtypeStruct((num_shards * acc_rows, LANES), jnp.float32),
        grid_spec=pltpu.PrefetchScalarGridSpec(
            num_scalar_prefetch=0,
            grid=(num_shards, steps_per_shard),
            in_specs=[
                pl.BlockSpec((tile_rows, LANES), in_index),
                pl.BlockSpec((tile_rows, LANES), in_index),
            ],
            out_specs=pl.BlockSpec((acc_rows, LANES), lambda c, i: (c, 0)),
        ),
        compiler_params=compiler_params,
    )(mu2d, sigma2d)

    # Single final cross-lane reduce of num_shards*acc_rows*128 f32 partials.
    return jnp.sum(out)


def kl_div_loss_ref(mu, sigma):
    mu = mu.astype(jnp.float32)
    sigma = sigma.astype(jnp.float32)
    return jnp.sum(-jnp.log(sigma) + (sigma ** 2 + mu ** 2) / 2.0 - 0.5)


if __name__ == "__main__":
    key = jax.random.PRNGKey(0)
    k_mu, k_sigma, k_mu2, k_sigma2 = jax.random.split(key, 4)

    # Main check: VAE-posterior style NCHW input (element count % 128 == 0).
    shape = (2, 4, 16, 16)
    mu_posterior = jax.random.normal(k_mu, shape, dtype=jnp.float32)
    # sigma must be positive for log(); use a softplus-like positive transform.
    sigma_posterior = (
        jax.nn.softplus(jax.random.normal(k_sigma, shape, dtype=jnp.float32)) + 1e-3
    )
    out = jax.block_until_ready(kl_div_loss(mu_posterior, sigma_posterior))
    ref = kl_div_loss_ref(mu_posterior, sigma_posterior)
    assert jnp.allclose(out, ref, rtol=1e-4, atol=1e-3), (out, ref)

    # Ragged-tail check (element count not a multiple of 128 -> host pad +
    # in-kernel masked-block path).
    shape2 = (3, 5, 7, 2)  # 210 elements
    mu2 = jax.random.normal(k_mu2, shape2, dtype=jnp.float32)
    sigma2 = (
        jax.nn.softplus(jax.random.normal(k_sigma2, shape2, dtype=jnp.float32)) + 1e-3
    )
    out2 = jax.block_until_ready(kl_div_loss(mu2, sigma2))
    ref2 = kl_div_loss_ref(mu2, sigma2)
    assert jnp.allclose(out2, ref2, rtol=1e-4, atol=1e-3), (out2, ref2)

    print("KERNEL_OK")
</pallas_src>

<mosaic_0001>
module attributes {stable_mosaic.version = 11 : i64} {
  func.func @kernel(%arg0: i32, %arg1: i32, %arg2: memref<16x128xf32, #tpu.memory_space<vmem>>, %arg3: memref<16x128xf32, #tpu.memory_space<vmem>>, %arg4: memref<8x128xf32, #tpu.memory_space<vmem>>) attributes {dimension_semantics = [#tpu.dimension_semantics<arbitrary>, #tpu.dimension_semantics<arbitrary>], iteration_bounds = array<i64: 1, 1>, scalar_prefetch = 0 : i64, scratch_operands = 0 : i64, tpu.core_type = #tpu.core_type<tc>, window_params = [{transform_indices = @transform_0, window_bounds = array<i64: 16, 128>}, {transform_indices = @transform_1, window_bounds = array<i64: 16, 128>}, {transform_indices = @transform_2, window_bounds = array<i64: 8, 128>}]} {
    %c0_i32 = arith.constant 0 : i32
    %0 = arith.cmpi eq, %arg1, %c0_i32 : i32
    %1 = arith.extui %0 : i1 to i32
    %c0_i32_0 = arith.constant 0 : i32
    %2 = arith.cmpi ne, %1, %c0_i32_0 : i32
    scf.if %2 {
      %cst_11 = arith.constant 0.000000e+00 : f32
      %21 = vector.broadcast %cst_11 : f32 to vector<8x128xf32>
      %c0_12 = arith.constant 0 : index
      %c0_13 = arith.constant 0 : index
      %22 = vector.load %arg4[%c0_12, %c0_13] : memref<8x128xf32, #tpu.memory_space<vmem>>, vector<8x128xf32>
      tpu.vector_store %arg4[%c0_12, %c0_13], %21 {strides = array<i32>} : memref<8x128xf32, #tpu.memory_space<vmem>>, vector<8x128xf32>,
    } else {
    }
    %c0 = arith.constant 0 : index
    %c0_1 = arith.constant 0 : index
    %3 = vector.load %arg2[%c0, %c0_1] : memref<16x128xf32, #tpu.memory_space<vmem>>, vector<16x128xf32>
    %c0_2 = arith.constant 0 : index
    %c0_3 = arith.constant 0 : index
    %4 = vector.load %arg3[%c0_2, %c0_3] : memref<16x128xf32, #tpu.memory_space<vmem>>, vector<16x128xf32>
    %5 = math.log %4 : vector<16x128xf32>
    %cst = arith.constant 0.000000e+00 : f32
    %6 = vector.broadcast %cst : f32 to vector<16x128xf32>
    %7 = arith.subf %6, %5 : vector<16x128xf32>
    %8 = arith.mulf %4, %4 : vector<16x128xf32>
    %9 = arith.mulf %3, %3 : vector<16x128xf32>
    %10 = arith.addf %8, %9 : vector<16x128xf32>
    %cst_4 = arith.constant 5.000000e-01 : f32
    %11 = vector.broadcast %cst_4 : f32 to vector<16x128xf32>
    %12 = arith.mulf %10, %11 : vector<16x128xf32>
    %13 = arith.addf %7, %12 : vector<16x128xf32>
    %cst_5 = arith.constant 5.000000e-01 : f32
    %14 = vector.broadcast %cst_5 : f32 to vector<16x128xf32>
    %15 = arith.subf %13, %14 : vector<16x128xf32>
    %c0_6 = arith.constant 0 : index
    %c0_7 = arith.constant 0 : index
    %16 = vector.load %arg4[%c0_6, %c0_7] : memref<8x128xf32, #tpu.memory_space<vmem>>, vector<8x128xf32>
    %17 = vector.shape_cast %15 : vector<16x128xf32> to vector<2x8x128xf32>
    %cst_8 = arith.constant dense<0.000000e+00> : vector<8x128xf32>
    %18 = vector.multi_reduction <add>, %17, %cst_8 [0] : vector<2x8x128xf32> to vector<8x128xf32>
    %19 = arith.addf %16, %18 : vector<8x128xf32>
    %c0_9 = arith.constant 0 : index
    %c0_10 = arith.constant 0 : index
    %20 = vector.load %arg4[%c0_9, %c0_10] : memref<8x128xf32, #tpu.memory_space<vmem>>, vector<8x128xf32>
    tpu.vector_store %arg4[%c0_9, %c0_10], %19 {strides = array<i32>} : memref<8x128xf32, #tpu.memory_space<vmem>>, vector<8x128xf32>,
    return
  }
  func.func @transform_0(%arg0: i32, %arg1: i32) -> (i32, i32) {
    %c1_i32 = arith.constant 1 : i32
    %0 = arith.muli %arg0, %c1_i32 : i32
    %1 = arith.addi %0, %arg1 : i32
    %c0_i32 = arith.constant 0 : i32
    %c0_i32_0 = arith.constant 0 : i32
    return %1, %c0_i32 : i32, i32
  }
  func.func @transform_1(%arg0: i32, %arg1: i32) -> (i32, i32) {
    %c1_i32 = arith.constant 1 : i32
    %0 = arith.muli %arg0, %c1_i32 : i32
    %1 = arith.addi %0, %arg1 : i32
    %c0_i32 = arith.constant 0 : i32
    %c0_i32_0 = arith.constant 0 : i32
    return %1, %c0_i32 : i32, i32
  }
  func.func @transform_2(%arg0: i32, %arg1: i32) -> (i32, i32) {
    %c0_i32 = arith.constant 0 : i32
    %c0_i32_0 = arith.constant 0 : i32
    return %arg0, %c0_i32 : i32, i32
  }
}

</mosaic_0001>

<llo_original>
// kernel: tpu_custom_call.1
$region0: #{tpu_custom_call.1}
  #allocation0 [shape = 'u32[]', space=smem, size = 0x4, offset = 0x4, fixed_abs, tag = 'smem constant byte address 0x4 - core index']
  #allocation1 [shape = 'u32[72,128]{1,0:T(1,128)}', space=vmem, size = 0x9000, scoped, tag = 'internal scratch']
  %s0 = inlined_call_operand.hbm [shape: f32[16,128], index: 0, kind: input, shape index: {}]
  %s1 = inlined_call_operand.hbm [shape: f32[16,128], index: 1, kind: input, shape index: {}]
  %s2 = inlined_call_operand.hbm [shape: f32[8,128], index: 2, kind: output, shape index: {}]
  %s3 = sld [smem:[#allocation0]]
  $region30: #{tpu_custom_call.1} parent=0
    _
  %s5 = ssub.s32 1, %s3
  %s6 = scalar_select 0, %s5, %s3
  $region1: #{tpu_custom_call.1} parent=0
    #allocation2 [shape = 'u8[8192]{0}', space=vmem, size = 0x2000, scoped, tag = 'input window, operand 0, single buffered']
    #allocation3 [shape = 's32[1]{0}', space=sflag, size = 0x4, scoped, tag = 'scoped memory for tpu_custom_call.1']
    #allocation4 [shape = 's32[1]{0}', space=sflag, size = 0x4, scoped, tag = 'scoped memory for tpu_custom_call.1']
    #allocation5 [shape = 'u8[8192]{0}', space=vmem, size = 0x2000, scoped, tag = 'input window, operand 1, single buffered']
    #allocation6 [shape = 's32[1]{0}', space=sflag, size = 0x4, scoped, tag = 'scoped memory for tpu_custom_call.1']
    #allocation7 [shape = 'u8[4096]{0}', space=vmem, size = 0x1000, scoped, tag = 'output window, operand 0, single buffered']
    %7 = vsyncpa [#allocation3], 0
    %8 = vsyncpa [#allocation6], 0
    %9 = vsyncpa [#allocation4], 0
    // Predicated region
    $region2: #{tpu_custom_call.1} parent=1 // pred_check
      _
    $region3: #{tpu_custom_call.1} parent=1 // pred_check_branch
      %11 = sbr.rel (0) target = $region5
    $region4: #{tpu_custom_call.1} parent=1 // pred_region
      %s12 = sadd.s32 0, 0
      %s13 = smul.u32 2, %s12
      %15 = vsyncadd [#allocation3], 0
      %s16 = smul.addr %s13, 8
      %s17 = scalar_lea.hbm %s0, %s16
      %s18 = sshll.u32 %s17, 4
      %s19 = int_to_ptr.hbm [resolvable:$true] %s18
      %s20 = sshll.u32 [#allocation2], 4
      %s21 = int_to_ptr.vmem [resolvable:$true] %s20
      %26 = dma.hbm_to_vmem [thread:$0]  %s19, 256, %s21, [#allocation3], 128, 128, 8
    $region5: #{tpu_custom_call.1} parent=1 // pred_fallthru
      _
    // Predicated region
    $region6: #{tpu_custom_call.1} parent=1 // pred_check
      _
    $region7: #{tpu_custom_call.1} parent=1 // pred_check_branch
      %28 = sbr.rel (0) target = $region9
    $region8: #{tpu_custom_call.1} parent=1 // pred_region
      %s29 = sadd.s32 0, 0
      %s30 = smul.u32 2, %s29
      %32 = vsyncadd [#allocation6], 0
      %s33 = smul.addr %s30, 8
      %s34 = scalar_lea.hbm %s1, %s33
      %s35 = sshll.u32 %s34, 4
      %s36 = int_to_ptr.hbm [resolvable:$true] %s35
      %s37 = sshll.u32 [#allocation5], 4
      %s38 = int_to_ptr.vmem [resolvable:$true] %s37
      %43 = dma.hbm_to_vmem [thread:$0]  %s36, 256, %s38, [#allocation6], 128, 128, 8
    $region9: #{tpu_custom_call.1} parent=1 // pred_fallthru
      _
    // Predicated region
    $region10: #{tpu_custom_call.1} parent=1 // pred_check
      _
    $region11: #{tpu_custom_call.1} parent=1 // pred_check_branch
      %45 = sbr.rel (0) target = $region13
    $region12: #{tpu_custom_call.1} parent=1 // pred_region
      %47 = dma.done [#allocation3], 256
    $region13: #{tpu_custom_call.1} parent=1 // pred_fallthru
      _
    // Predicated region
    $region14: #{tpu_custom_call.1} parent=1 // pred_check
      _
    $region15: #{tpu_custom_call.1} parent=1 // pred_check_branch
      %49 = sbr.rel (0) target = $region17
    $region16: #{tpu_custom_call.1} parent=1 // pred_region
      %51 = dma.done [#allocation6], 256
    $region17: #{tpu_custom_call.1} parent=1 // pred_fallthru
      _
    %s52 = sadd.s32 0, 0
    %s53 = smul.u32 2, %s52
    %s54 = sadd.s32 0, 0
    %s55 = smul.u32 2, %s54
    %p56 = scmp.eq.s32.totalorder 0, 0
    // Predicated region
    $region18: #{tpu_custom_call.1} parent=1 // pred_check
      %p57 = pneg %p56
    $region19: #{tpu_custom_call.1} parent=1 // pred_check_branch
      %59 = sbr.rel (%p57) target = $region21
    $region20: #{tpu_custom_call.1} parent=1 // pred_region
      %60 = vst [vmem:[#allocation7] sm:$0xff] 0.0
    $region21: #{tpu_custom_call.1} parent=1 // pred_fallthru
      _
    %v61 = vld [vmem:[#allocation2] sm:$0xff]
    %v62 = vld [vmem:[#allocation2 + $0x8] sm:$0xff]
    %v63 = vld [vmem:[#allocation5] sm:$0xff]
    %v64 = vld [vmem:[#allocation5 + $0x8] sm:$0xff]
    %v65 = vlog2.pop %v63
    %v66 = vmul.f32 %v65, 0.6931472
    %v67 = vlog2.pop %v64
    %v68 = vmul.f32 %v67, 0.6931472
    %v69 = vsub.f32 0.0, %v66
    %v70 = vsub.f32 0.0, %v68
    %v71 = vmul.f32 %v63, %v63
    %v72 = vmul.f32 %v64, %v64
    %v73 = vmul.f32 %v61, %v61
    %v74 = vmul.f32 %v62, %v62
    %v75 = vadd.f32 %v71, %v73
    %v76 = vadd.f32 %v72, %v74
    %v77 = vmul.f32 %v75, 0.5
    %v78 = vmul.f32 %v76, 0.5
    %v79 = vadd.f32 %v69, %v77
    %v80 = vadd.f32 %v70, %v78
    %v81 = vsub.f32 %v79, 0.5
    %v82 = vsub.f32 %v80, 0.5
    %v83 = vld [vmem:[#allocation7] sm:$0xff]
    %v84 = vadd.f32 %v81, %v82
    %v85 = vadd.f32 %v83, %v84
    %86 = vst [vmem:[#allocation7] sm:$0xff] %v85
    // Predicated region
    $region22: #{tpu_custom_call.1} parent=1 // pred_check
      _
    $region23: #{tpu_custom_call.1} parent=1 // pred_check_branch
      %88 = sbr.rel (0) target = $region25
    $region24: #{tpu_custom_call.1} parent=1 // pred_region
      %90 = vsyncadd [#allocation4], 0
      %s92 = sshll.u32 [#allocation7], 4
      %s93 = int_to_ptr.vmem [resolvable:$true] %s92
      %s94 = sshll.u32 %s2, 4
      %s95 = int_to_ptr.hbm [resolvable:$true] %s94
      %97 = dma.vmem_to_hbm [thread:$0]  %s93, 128, %s95, [#allocation4]
    $region25: #{tpu_custom_call.1} parent=1 // pred_fallthru
      _
    // Predicated region
    $region26: #{tpu_custom_call.1} parent=1 // pred_check
      _
    $region27: #{tpu_custom_call.1} parent=1 // pred_check_branch
      %99 = sbr.rel (0) target = $region29
    $region28: #{tpu_custom_call.1} parent=1 // pred_region
      %101 = dma.done [#allocation4], 128
    $region29: #{tpu_custom_call.1} parent=1 // pred_fallthru
      _
    %102 = vsyncpa [#allocation3], 1
    %103 = vsyncpa [#allocation6], 1
    %104 = vsyncpa [#allocation4], 1

</llo_original>
